<compile_context>
chip_gen: v5e
topology: v5e:2x2
jax: 0.10.0
libtpu: 0.0.40
codegen_flags: <defaults>
</compile_context>

<pallas_src>
import functools
import math

import jax
import jax.numpy as jnp
from jax.experimental import pallas as pl
from jax.experimental.pallas import tpu as pltpu

_LANE = 128
_SUB = 16          # sublane granule covering bf16 (16,128) and f32 (8,128) tiles


def _round_up(n, m):
    return ((n + m - 1) // m) * m


def _pad_to(a, shape, value=0):
    pads = [(0, t - s) for s, t in zip(a.shape, shape)]
    return jnp.pad(a, pads, constant_values=value)


def _vmem_capacity_bytes():
    """Physical VMEM per TensorCore; conservative default (v7x = 64 MiB) if unqueryable."""
    try:
        return int(pltpu.get_tpu_info().vmem_capacity_bytes)
    except Exception:
        return 64 * (1 << 20)


def _num_tensorcores():
    """Best-effort TensorCore-per-chip count (v7x has 2, v5e/v6e have 1)."""
    try:
        d = jax.devices()[0]
        n = getattr(d, "num_cores", None)
        if n:
            return int(n)
        if "v7" in str(getattr(d, "device_kind", "")).lower():
            return 2
    except Exception:
        pass
    return 1


def _pick_batch_tile(B, Sp, Fp, L1p, L2p, Cp, Q, vmem_capacity, n_cores):
    """Largest divisor of B whose per-step working set fits ~70% of physical VMEM.

    The estimate counts the resident weights (x2: Pallas allocates double buffers even for
    constant-index blocks), the double-buffered x/mask inputs, f32+bf16 intermediates, and
    the double-buffered outputs including the Q factor of the attention-score output.
    On multi-TensorCore parts we prefer a step count that divides evenly across cores.
    """
    budget = int(0.70 * vmem_capacity)

    def bytes_for(tb):
        weights = 2 * (Fp * L1p * 2 + L1p * L2p * 2 + L1p * Q * 2
                       + L2p * Cp * 4 + (L1p + L2p + Cp) * 4)
        x_in = 2 * tb * Sp * Fp * 2                       # double-buffered bf16 input tile
        mask_in = 2 * tb * Sp * 4                         # double-buffered int32 mask
        inter = tb * Sp * (6 * L1p + 8 * L2p + 8 * Q + 16)  # h1(f32+bf16), h2(f32), scores/temps
        outs = 2 * (tb * L2p + tb * Cp + tb * Sp * Q) * 4
        return weights + x_in + mask_in + inter + outs

    divs = [d for d in range(1, B + 1) if B % d == 0 and bytes_for(d) <= budget]
    if not divs:
        return 1
    if n_cores >= 2:
        multi = [d for d in divs if (B // d) % n_cores == 0 and (B // d) >= n_cores]
        good = [d for d in multi if d * Sp >= 512] or multi
        if good:
            return max(good)
    return max(divs)


def _agata_kernel(x_ref, mask_ref, w1_ref, b1_ref, w2_ref, b2_ref,
                  qt_ref, wh_ref, bh_ref,
                  emb_ref, logit_ref, attn_ref,
                  *, scaled, absolute, padding_indicator, inv_sqrt_l1):
    TB, Sp, Fp = x_ref.shape
    L2p = emb_ref.shape[-1]
    Q = attn_ref.shape[-1]

    # ---- forward_features: linear1 -> ReLU -> linear2 -> ReLU over all TB*Sp rows ----
    xf = x_ref[...].reshape(TB * Sp, Fp)                                  # bf16
    h1 = jnp.dot(xf, w1_ref[...], preferred_element_type=jnp.float32) + b1_ref[...]
    h1 = jnp.maximum(h1, 0.0)                                             # (TB*Sp, L1p) f32
    h1c = h1.astype(w2_ref.dtype)                                         # bf16 copy for the MXU
    h2 = jnp.dot(h1c, w2_ref[...], preferred_element_type=jnp.float32) + b2_ref[...]
    h2 = jnp.maximum(h2, 0.0)                                             # (TB*Sp, L2p) f32

    # ---- attention scores for ALL rows in one matmul: (TB*Sp, L1p) @ (L1p, Q) ----
    s = jnp.dot(h1c, qt_ref[...], preferred_element_type=jnp.float32)     # (TB*Sp, Q)
    if scaled:
        s = s * inv_sqrt_l1
    if absolute:
        s = jnp.abs(s)

    is_pad = mask_ref[...] == padding_indicator                           # (TB, Sp, 1)
    masked = jnp.where(is_pad, jnp.float32(-1e30), s.reshape(TB, Sp, Q))  # (TB, Sp, Q)
    attn_ref[...] = masked.astype(attn_ref.dtype)                         # pre-softmax scores out

    # ---- softmax over the sequence axis (axis=1), vectorized over the whole tile ----
    m = jnp.max(masked, axis=1, keepdims=True)                            # (TB, 1, Q)
    e = jnp.exp(masked - m)                                               # EUP
    w = e * pl.reciprocal(jnp.sum(e, axis=1, keepdims=True), approx=True)  # (TB, Sp, Q)

    # reduce=True sums over queries first (linearity), then a VPU multiply + segment sum
    # over S replaces TB separate M=1 value matmuls.
    w_sum = jnp.sum(w, axis=2, keepdims=True)                             # (TB, Sp, 1)
    emb = jnp.sum(w_sum * h2.reshape(TB, Sp, L2p), axis=1)                # (TB, L2p)
    emb_ref[...] = emb.reshape(TB, 1, L2p).astype(emb_ref.dtype)

    # ---- output head ("label"): one batched linear; sigmoid is applied in the wrapper ----
    logits = jnp.dot(emb, wh_ref[...], preferred_element_type=jnp.float32) + bh_ref[...]
    logit_ref[...] = logits.reshape(TB, 1, -1).astype(logit_ref.dtype)


def agata_forward(x, padding_masks, params, *, scaled_attention=False,
                  absolute_attention=False, padding_indicator=1,
                  compute_dtype=jnp.bfloat16):
    B, S, Fin = x.shape
    L1 = params["w1"].shape[1]
    L2 = params["w2"].shape[1]
    Q = params["queries"].shape[0]
    C = params["wh"].shape[1]

    # Lane-dense (128) padding for feature dims; sequence only needs sublane alignment.
    Sp = _round_up(S, _SUB)
    Fp = _round_up(Fin, _LANE)
    L1p, L2p, Cp = _round_up(L1, _LANE), _round_up(L2, _LANE), _round_up(C, _LANE)

    x_p = _pad_to(x, (B, Sp, Fp)).astype(compute_dtype)
    # Padded sequence positions are flagged as padding so they never contribute to attention.
    mask_p = _pad_to(padding_masks.astype(jnp.int32), (B, Sp),
                     value=int(padding_indicator)).reshape(B, Sp, 1)

    w1 = _pad_to(params["w1"], (Fp, L1p)).astype(compute_dtype)
    b1 = _pad_to(params["b1"], (1, L1p)).astype(jnp.float32)
    w2 = _pad_to(params["w2"], (L1p, L2p)).astype(compute_dtype)
    b2 = _pad_to(params["b2"], (1, L2p)).astype(jnp.float32)
    qT = _pad_to(params["queries"].T, (L1p, Q)).astype(compute_dtype)   # pre-transposed queries
    wh = _pad_to(params["wh"], (L2p, Cp)).astype(jnp.float32)           # head is tiny: keep f32
    bh = _pad_to(params["bh"], (1, Cp)).astype(jnp.float32)

    vmem_cap = _vmem_capacity_bytes()
    n_cores = _num_tensorcores()
    TB = _pick_batch_tile(B, Sp, Fp, L1p, L2p, Cp, Q, vmem_cap, n_cores)
    grid = (B // TB,)
    vmem_limit = int(min(0.8 * vmem_cap, 100 * (1 << 20)))

    kernel = functools.partial(
        _agata_kernel,
        scaled=scaled_attention,
        absolute=absolute_attention,
        padding_indicator=int(padding_indicator),
        inv_sqrt_l1=float(1.0 / math.sqrt(L1)),
    )

    full2 = lambda b: (0, 0)         # weights: constant block index -> not re-DMA'd per step
    per_b3 = lambda b: (b, 0, 0)     # per-batch-tile 3-D blocks

    emb, logits, attn = pl.pallas_call(
        kernel,
        grid=grid,
        in_specs=[
            pl.BlockSpec((TB, Sp, Fp), per_b3),          # x (bf16)
            pl.BlockSpec((TB, Sp, 1), per_b3),           # padding mask (int32)
            pl.BlockSpec((Fp, L1p), full2),              # W1
            pl.BlockSpec((1, L1p), full2),               # b1
            pl.BlockSpec((L1p, L2p), full2),             # W2
            pl.BlockSpec((1, L2p), full2),               # b2
            pl.BlockSpec((L1p, Q), full2),               # learned queries, transposed
            pl.BlockSpec((L2p, Cp), full2),              # head W
            pl.BlockSpec((1, Cp), full2),                # head b
        ],
        out_specs=(
            pl.BlockSpec((TB, 1, L2p), per_b3),          # backbone embedding
            pl.BlockSpec((TB, 1, Cp), per_b3),           # head logits
            pl.BlockSpec((TB, Sp, Q), per_b3),           # attention scores (kernel layout)
        ),
        out_shape=(
            jax.ShapeDtypeStruct((B, 1, L2p), jnp.float32),
            jax.ShapeDtypeStruct((B, 1, Cp), jnp.float32),
            jax.ShapeDtypeStruct((B, Sp, Q), jnp.float32),
        ),
        compiler_params=pltpu.CompilerParams(
            dimension_semantics=("parallel",),
            vmem_limit_bytes=vmem_limit,
        ),
    )(x_p, mask_p, w1, b1, w2, b2, qT, wh, bh)

    logits_s = logits.reshape(B, Cp)[:, :C]
    return {
        "backbone_embedding": emb.reshape(B, L2p)[:, :L2],
        "heads_logits": {"label": logits_s},
        "heads_activations": {"label": jax.nn.sigmoid(logits_s)},   # sigmoid in the wrapper
        "attn_scores": jnp.transpose(attn[:, :S, :], (0, 2, 1)),    # tiny (B,S,Q)->(B,Q,S)
    }


def agata_reference(x, padding_masks, params, *, scaled_attention=False,
                    absolute_attention=False, padding_indicator=1):
    """Pure-JAX f32 reference for correctness checking."""
    L1 = params["w1"].shape[1]
    h1 = jax.nn.relu(x @ params["w1"] + params["b1"])
    h2 = jax.nn.relu(h1 @ params["w2"] + params["b2"])
    scores = jnp.einsum("qf,bsf->bqs", params["queries"], h1)
    if scaled_attention:
        scores = scores / math.sqrt(L1)
    if absolute_attention:
        scores = jnp.abs(scores)
    is_pad = (padding_masks == padding_indicator)[:, None, :]
    masked = jnp.where(is_pad, jnp.float32(-1e30), scores)
    attn = jax.nn.softmax(masked, axis=-1)
    emb = jnp.einsum("bqs,bsl->bl", attn, h2)      # reduce=True: sum over queries
    logits = emb @ params["wh"] + params["bh"]
    return emb, logits, jax.nn.sigmoid(logits), masked


def init_params(key, in_features, layer1_out, layer2_out, n_queries, n_classes):
    """Deterministic init mimicking nn.Linear default U(-1/sqrt(fan_in), 1/sqrt(fan_in))."""
    ks = jax.random.split(key, 7)

    def lin(kw, kb, fan_in, fan_out):
        bound = 1.0 / (fan_in ** 0.5)
        w = jax.random.uniform(kw, (fan_in, fan_out), jnp.float32, -bound, bound)
        b = jax.random.uniform(kb, (1, fan_out), jnp.float32, -bound, bound)
        return w, b

    w1, b1 = lin(ks[0], ks[1], in_features, layer1_out)
    w2, b2 = lin(ks[2], ks[3], layer1_out, layer2_out)
    queries = jax.random.normal(ks[4], (n_queries, layer1_out), jnp.float32)
    wh, bh = lin(ks[5], ks[6], layer2_out, n_classes)
    return {"w1": w1, "b1": b1, "w2": w2, "b2": b2,
            "queries": queries, "wh": wh, "bh": bh}


if __name__ == "__main__":
    B, S, Fin, L1, L2, Q, C = 2, 8, 32, 64, 32, 1, 3
    key = jax.random.PRNGKey(0)
    kx, km, kp = jax.random.split(key, 3)

    x = jax.random.normal(kx, (B, S, Fin), jnp.float32)
    # padding_masks: 1 indicates padding; mark the last 2 positions of each sequence as padding.
    padding_masks = jnp.zeros((B, S), jnp.int32).at[:, -2:].set(1)

    params = init_params(kp, Fin, L1, L2, Q, C)

    out = agata_forward(x, padding_masks, params,
                        scaled_attention=False, absolute_attention=False,
                        padding_indicator=1)
    jax.block_until_ready(out)

    assert out["backbone_embedding"].shape == (B, L2)
    assert out["heads_logits"]["label"].shape == (B, C)
    assert out["heads_activations"]["label"].shape == (B, C)
    assert out["attn_scores"].shape == (B, Q, S)

    # Loose-tolerance check vs. an f32 pure-JAX reference (kernel matmuls run in bf16).
    emb_r, log_r, act_r, attn_r = agata_reference(
        x, padding_masks, params, scaled_attention=False,
        absolute_attention=False, padding_indicator=1)
    assert bool(jnp.allclose(out["backbone_embedding"], emb_r, rtol=1e-1, atol=5e-2))
    assert bool(jnp.allclose(out["heads_logits"]["label"], log_r, rtol=1e-1, atol=5e-2))
    assert bool(jnp.allclose(out["heads_activations"]["label"], act_r, rtol=1e-1, atol=5e-2))
    assert bool(jnp.allclose(out["attn_scores"], attn_r, rtol=1e-1, atol=1e-1))

    print("KERNEL_OK")
</pallas_src>

<mosaic_0001>
module attributes {stable_mosaic.version = 11 : i64} {
  func.func @_agata_kernel(%arg0: i32, %arg1: memref<2x16x128xbf16, #tpu.memory_space<vmem>>, %arg2: memref<2x16x1xi32, #tpu.memory_space<vmem>>, %arg3: memref<128x128xbf16, #tpu.memory_space<vmem>>, %arg4: memref<1x128xf32, #tpu.memory_space<vmem>>, %arg5: memref<128x128xbf16, #tpu.memory_space<vmem>>, %arg6: memref<1x128xf32, #tpu.memory_space<vmem>>, %arg7: memref<128x1xbf16, #tpu.memory_space<vmem>>, %arg8: memref<128x128xf32, #tpu.memory_space<vmem>>, %arg9: memref<1x128xf32, #tpu.memory_space<vmem>>, %arg10: memref<2x1x128xf32, #tpu.memory_space<vmem>>, %arg11: memref<2x1x128xf32, #tpu.memory_space<vmem>>, %arg12: memref<2x16x1xf32, #tpu.memory_space<vmem>>) attributes {dimension_semantics = [#tpu.dimension_semantics<parallel>], iteration_bounds = array<i64: 1>, scalar_prefetch = 0 : i64, scratch_operands = 0 : i64, tpu.core_type = #tpu.core_type<tc>, window_params = [{transform_indices = @transform_0, window_bounds = array<i64: 2, 16, 128>}, {transform_indices = @transform_1, window_bounds = array<i64: 2, 16, 1>}, {pipeline_mode = #tpu.pipeline_mode<synchronous>, transform_indices = @transform_2, window_bounds = array<i64: 128, 128>}, {pipeline_mode = #tpu.pipeline_mode<synchronous>, transform_indices = @transform_3, window_bounds = array<i64: 1, 128>}, {pipeline_mode = #tpu.pipeline_mode<synchronous>, transform_indices = @transform_4, window_bounds = array<i64: 128, 128>}, {pipeline_mode = #tpu.pipeline_mode<synchronous>, transform_indices = @transform_5, window_bounds = array<i64: 1, 128>}, {pipeline_mode = #tpu.pipeline_mode<synchronous>, transform_indices = @transform_6, window_bounds = array<i64: 128, 1>}, {pipeline_mode = #tpu.pipeline_mode<synchronous>, transform_indices = @transform_7, window_bounds = array<i64: 128, 128>}, {pipeline_mode = #tpu.pipeline_mode<synchronous>, transform_indices = @transform_8, window_bounds = array<i64: 1, 128>}, {transform_indices = @transform_9, window_bounds = array<i64: 2, 1, 128>}, {transform_indices = @transform_10, window_bounds = array<i64: 2, 1, 128>}, {transform_indices = @transform_11, window_bounds = array<i64: 2, 16, 1>}]} {
    %c0 = arith.constant 0 : index
    %c0_0 = arith.constant 0 : index
    %c0_1 = arith.constant 0 : index
    %0 = vector.load %arg1[%c0, %c0_0, %c0_1] : memref<2x16x128xbf16, #tpu.memory_space<vmem>>, vector<2x16x128xbf16>
    %1 = vector.shape_cast %0 : vector<2x16x128xbf16> to vector<32x128xbf16>
    %c0_2 = arith.constant 0 : index
    %c0_3 = arith.constant 0 : index
    %2 = vector.load %arg3[%c0_2, %c0_3] : memref<128x128xbf16, #tpu.memory_space<vmem>>, vector<128x128xbf16>
    %cst = arith.constant dense<0.000000e+00> : vector<32x128xf32>
    %3 = tpu.matmul %1, %2, %cst {dimension_numbers = #tpu.dot_dimension_numbers<[1], [0], [0], [1], [0, 0, 1, 1], [], []>} : vector<32x128xbf16>, vector<128x128xbf16>, vector<32x128xf32> -> vector<32x128xf32>
    %c0_4 = arith.constant 0 : index
    %c0_5 = arith.constant 0 : index
    %4 = vector.load %arg4[%c0_4, %c0_5] : memref<1x128xf32, #tpu.memory_space<vmem>>, vector<1x128xf32>
    %5 = vector.broadcast %4 : vector<1x128xf32> to vector<32x128xf32>
    %6 = arith.addf %3, %5 : vector<32x128xf32>
    %cst_6 = arith.constant 0.000000e+00 : f32
    %7 = vector.broadcast %cst_6 : f32 to vector<32x128xf32>
    %8 = arith.maximumf %6, %7 : vector<32x128xf32>
    %9 = arith.truncf %8 : vector<32x128xf32> to vector<32x128xbf16>
    %c0_7 = arith.constant 0 : index
    %c0_8 = arith.constant 0 : index
    %10 = vector.load %arg5[%c0_7, %c0_8] : memref<128x128xbf16, #tpu.memory_space<vmem>>, vector<128x128xbf16>
    %cst_9 = arith.constant dense<0.000000e+00> : vector<32x128xf32>
    %11 = tpu.matmul %9, %10, %cst_9 {dimension_numbers = #tpu.dot_dimension_numbers<[1], [0], [0], [1], [0, 0, 1, 1], [], []>} : vector<32x128xbf16>, vector<128x128xbf16>, vector<32x128xf32> -> vector<32x128xf32>
    %c0_10 = arith.constant 0 : index
    %c0_11 = arith.constant 0 : index
    %12 = vector.load %arg6[%c0_10, %c0_11] : memref<1x128xf32, #tpu.memory_space<vmem>>, vector<1x128xf32>
    %13 = vector.broadcast %12 : vector<1x128xf32> to vector<32x128xf32>
    %14 = arith.addf %11, %13 : vector<32x128xf32>
    %cst_12 = arith.constant 0.000000e+00 : f32
    %15 = vector.broadcast %cst_12 : f32 to vector<32x128xf32>
    %16 = arith.maximumf %14, %15 : vector<32x128xf32>
    %c0_13 = arith.constant 0 : index
    %c0_14 = arith.constant 0 : index
    %17 = vector.load %arg7[%c0_13, %c0_14] : memref<128x1xbf16, #tpu.memory_space<vmem>>, vector<128x1xbf16>
    %cst_15 = arith.constant dense<0.000000e+00> : vector<32x1xf32>
    %18 = tpu.matmul %9, %17, %cst_15 {dimension_numbers = #tpu.dot_dimension_numbers<[1], [0], [0], [1], [0, 0, 1, 1], [], []>} : vector<32x128xbf16>, vector<128x1xbf16>, vector<32x1xf32> -> vector<32x1xf32>
    %c0_16 = arith.constant 0 : index
    %c0_17 = arith.constant 0 : index
    %c0_18 = arith.constant 0 : index
    %19 = vector.load %arg2[%c0_16, %c0_17, %c0_18] : memref<2x16x1xi32, #tpu.memory_space<vmem>>, vector<2x16x1xi32>
    %c1_i32 = arith.constant 1 : i32
    %20 = vector.broadcast %c1_i32 : i32 to vector<2x16x1xi32>
    %21 = arith.cmpi eq, %19, %20 : vector<2x16x1xi32>
    %22 = vector.shape_cast %18 : vector<32x1xf32> to vector<2x16x1xf32>
    %cst_19 = arith.constant -1.000000e+30 : f32
    %23 = vector.broadcast %cst_19 : f32 to vector<2x16x1xf32>
    %24 = arith.select %21, %23, %22 : vector<2x16x1xi1>, vector<2x16x1xf32>
    %c0_20 = arith.constant 0 : index
    %c0_21 = arith.constant 0 : index
    %c0_22 = arith.constant 0 : index
    %25 = vector.load %arg12[%c0_20, %c0_21, %c0_22] : memref<2x16x1xf32, #tpu.memory_space<vmem>>, vector<2x16x1xf32>
    tpu.vector_store %arg12[%c0_20, %c0_21, %c0_22], %24 {strides = array<i32>} : memref<2x16x1xf32, #tpu.memory_space<vmem>>, vector<2x16x1xf32>,
    %cst_23 = arith.constant dense<0xFF800000> : vector<2x1xf32>
    %26 = vector.multi_reduction <maximumf>, %24, %cst_23 [1] : vector<2x16x1xf32> to vector<2x1xf32>
    %27 = vector.shape_cast %26 : vector<2x1xf32> to vector<2x1x1xf32>
    %28 = vector.broadcast %27 : vector<2x1x1xf32> to vector<2x16x1xf32>
    %29 = arith.subf %24, %28 : vector<2x16x1xf32>
    %30 = math.exp %29 : vector<2x16x1xf32>
    %cst_24 = arith.constant dense<0.000000e+00> : vector<2x1xf32>
    %31 = vector.multi_reduction <add>, %30, %cst_24 [1] : vector<2x16x1xf32> to vector<2x1xf32>
    %32 = vector.shape_cast %31 : vector<2x1xf32> to vector<2x1x1xf32>
    %33 = tpu.reciprocal %32 {approx = true} : vector<2x1x1xf32> -> vector<2x1x1xf32>
    %34 = vector.broadcast %33 : vector<2x1x1xf32> to vector<2x16x1xf32>
    %35 = arith.mulf %30, %34 : vector<2x16x1xf32>
    %cst_25 = arith.constant dense<0.000000e+00> : vector<2x16xf32>
    %36 = vector.multi_reduction <add>, %35, %cst_25 [2] : vector<2x16x1xf32> to vector<2x16xf32>
    %37 = vector.shape_cast %36 : vector<2x16xf32> to vector<2x16x1xf32>
    %38 = vector.shape_cast %16 : vector<32x128xf32> to vector<2x16x128xf32>
    %39 = vector.broadcast %37 : vector<2x16x1xf32> to vector<2x16x128xf32>
    %40 = arith.mulf %39, %38 : vector<2x16x128xf32>
    %cst_26 = arith.constant dense<0.000000e+00> : vector<2x128xf32>
    %41 = vector.multi_reduction <add>, %40, %cst_26 [1] : vector<2x16x128xf32> to vector<2x128xf32>
    %42 = vector.shape_cast %41 : vector<2x128xf32> to vector<2x1x128xf32>
    %c0_27 = arith.constant 0 : index
    %c0_28 = arith.constant 0 : index
    %c0_29 = arith.constant 0 : index
    %43 = vector.load %arg10[%c0_27, %c0_28, %c0_29] : memref<2x1x128xf32, #tpu.memory_space<vmem>>, vector<2x1x128xf32>
    tpu.vector_store %arg10[%c0_27, %c0_28, %c0_29], %42 {strides = array<i32>} : memref<2x1x128xf32, #tpu.memory_space<vmem>>, vector<2x1x128xf32>,
    %c0_30 = arith.constant 0 : index
    %c0_31 = arith.constant 0 : index
    %44 = vector.load %arg8[%c0_30, %c0_31] : memref<128x128xf32, #tpu.memory_space<vmem>>, vector<128x128xf32>
    %cst_32 = arith.constant dense<0.000000e+00> : vector<2x128xf32>
    %45 = tpu.matmul %41, %44, %cst_32 {dimension_numbers = #tpu.dot_dimension_numbers<[1], [0], [0], [1], [0, 0, 1, 1], [], []>} : vector<2x128xf32>, vector<128x128xf32>, vector<2x128xf32> -> vector<2x128xf32>
    %c0_33 = arith.constant 0 : index
    %c0_34 = arith.constant 0 : index
    %46 = vector.load %arg9[%c0_33, %c0_34] : memref<1x128xf32, #tpu.memory_space<vmem>>, vector<1x128xf32>
    %47 = vector.broadcast %46 : vector<1x128xf32> to vector<2x128xf32>
    %48 = arith.addf %45, %47 : vector<2x128xf32>
    %49 = vector.shape_cast %48 : vector<2x128xf32> to vector<2x1x128xf32>
    %c0_35 = arith.constant 0 : index
    %c0_36 = arith.constant 0 : index
    %c0_37 = arith.constant 0 : index
    %50 = vector.load %arg11[%c0_35, %c0_36, %c0_37] : memref<2x1x128xf32, #tpu.memory_space<vmem>>, vector<2x1x128xf32>
    tpu.vector_store %arg11[%c0_35, %c0_36, %c0_37], %49 {strides = array<i32>} : memref<2x1x128xf32, #tpu.memory_space<vmem>>, vector<2x1x128xf32>,
    return
  }
  func.func @transform_0(%arg0: i32) -> (i32, i32, i32) {
    %c0_i32 = arith.constant 0 : i32
    %c0_i32_0 = arith.constant 0 : i32
    %c0_i32_1 = arith.constant 0 : i32
    return %arg0, %c0_i32, %c0_i32_0 : i32, i32, i32
  }
  func.func @transform_1(%arg0: i32) -> (i32, i32, i32) {
    %c0_i32 = arith.constant 0 : i32
    %c0_i32_0 = arith.constant 0 : i32
    %c0_i32_1 = arith.constant 0 : i32
    return %arg0, %c0_i32, %c0_i32_0 : i32, i32, i32
  }
  func.func @transform_2(%arg0: i32) -> (i32, i32) {
    %c0_i32 = arith.constant 0 : i32
    %c0_i32_0 = arith.constant 0 : i32
    %c0_i32_1 = arith.constant 0 : i32
    return %c0_i32, %c0_i32_0 : i32, i32
  }
  func.func @transform_3(%arg0: i32) -> (i32, i32) {
    %c0_i32 = arith.constant 0 : i32
    %c0_i32_0 = arith.constant 0 : i32
    %c0_i32_1 = arith.constant 0 : i32
    return %c0_i32, %c0_i32_0 : i32, i32
  }
  func.func @transform_4(%arg0: i32) -> (i32, i32) {
    %c0_i32 = arith.constant 0 : i32
    %c0_i32_0 = arith.constant 0 : i32
    %c0_i32_1 = arith.constant 0 : i32
    return %c0_i32, %c0_i32_0 : i32, i32
  }
  func.func @transform_5(%arg0: i32) -> (i32, i32) {
    %c0_i32 = arith.constant 0 : i32
    %c0_i32_0 = arith.constant 0 : i32
    %c0_i32_1 = arith.constant 0 : i32
    return %c0_i32, %c0_i32_0 : i32, i32
  }
  func.func @transform_6(%arg0: i32) -> (i32, i32) {
    %c0_i32 = arith.constant 0 : i32
    %c0_i32_0 = arith.constant 0 : i32
    %c0_i32_1 = arith.constant 0 : i32
    return %c0_i32, %c0_i32_0 : i32, i32
  }
  func.func @transform_7(%arg0: i32) -> (i32, i32) {
    %c0_i32 = arith.constant 0 : i32
    %c0_i32_0 = arith.constant 0 : i32
    %c0_i32_1 = arith.constant 0 : i32
    return %c0_i32, %c0_i32_0 : i32, i32
  }
  func.func @transform_8(%arg0: i32) -> (i32, i32) {
    %c0_i32 = arith.constant 0 : i32
    %c0_i32_0 = arith.constant 0 : i32
    %c0_i32_1 = arith.constant 0 : i32
    return %c0_i32, %c0_i32_0 : i32, i32
  }
  func.func @transform_9(%arg0: i32) -> (i32, i32, i32) {
    %c0_i32 = arith.constant 0 : i32
    %c0_i32_0 = arith.constant 0 : i32
    %c0_i32_1 = arith.constant 0 : i32
    return %arg0, %c0_i32, %c0_i32_0 : i32, i32, i32
  }
  func.func @transform_10(%arg0: i32) -> (i32, i32, i32) {
    %c0_i32 = arith.constant 0 : i32
    %c0_i32_0 = arith.constant 0 : i32
    %c0_i32_1 = arith.constant 0 : i32
    return %arg0, %c0_i32, %c0_i32_0 : i32, i32, i32
  }
  func.func @transform_11(%arg0: i32) -> (i32, i32, i32) {
    %c0_i32 = arith.constant 0 : i32
    %c0_i32_0 = arith.constant 0 : i32
    %c0_i32_1 = arith.constant 0 : i32
    return %arg0, %c0_i32, %c0_i32_0 : i32, i32, i32
  }
}

</mosaic_0001>

<llo_original>
// kernel: tpu_custom_call.1
$region0: #{tpu_custom_call.1}
  #allocation0 [shape = 'u32[]', space=smem, size = 0x4, offset = 0x4, fixed_abs, tag = 'smem constant byte address 0x4 - core index']
  #allocation1 [shape = 'u32[72,128]{1,0:T(1,128)}', space=vmem, size = 0x9000, scoped, tag = 'internal scratch']
  %s0 = inlined_call_operand.vmem [shape: bf16[2,16,128], index: 0, kind: input, shape index: {}]
  %s1 = inlined_call_operand.vmem [shape: s32[2,16,1], index: 1, kind: input, shape index: {}]
  %s2 = inlined_call_operand.vmem [shape: bf16[128,128], index: 2, kind: input, shape index: {}]
  %s3 = inlined_call_operand.vmem [shape: f32[1,128], index: 3, kind: input, shape index: {}]
  %s4 = inlined_call_operand.hbm [shape: bf16[128,128], index: 4, kind: input, shape index: {}]
  %s5 = inlined_call_operand.vmem [shape: f32[1,128], index: 5, kind: input, shape index: {}]
  %s6 = inlined_call_operand.vmem [shape: bf16[128,1], index: 6, kind: input, shape index: {}]
  %s7 = inlined_call_operand.hbm [shape: f32[128,128], index: 7, kind: input, shape index: {}]
  %s8 = inlined_call_operand.vmem [shape: f32[1,128], index: 8, kind: input, shape index: {}]
  %s9 = inlined_call_operand.hbm [shape: f32[2,1,128], index: 9, kind: output, shape index: {0}]
  %s10 = inlined_call_operand.hbm [shape: f32[2,1,128], index: 10, kind: output, shape index: {1}]
  %s11 = inlined_call_operand.vmem [shape: f32[2,16,1], index: 11, kind: output, shape index: {2}]
  %12 = xla_tuple %s9, %s10, %s11
  %s13 = sld [smem:[#allocation0]]
  $region70: #{tpu_custom_call.1} parent=0
    _
  %s15 = ssub.s32 1, %s13
  %s16 = scalar_select 0, %s15, %s13
  $region1: #{tpu_custom_call.1} parent=0
    #allocation2 [shape = 'u8[32768]{0}', space=vmem, size = 0x8000, scoped, tag = 'input window, operand 4, single buffered']
    #allocation3 [shape = 's32[1]{0}', space=sflag, size = 0x4, scoped, tag = 'scoped memory for tpu_custom_call.1']
    #allocation4 [shape = 's32[1]{0}', space=sflag, size = 0x4, scoped, tag = 'scoped memory for tpu_custom_call.1']
    #allocation5 [shape = 'u8[65536]{0}', space=vmem, size = 0x10000, scoped, tag = 'input window, operand 7, single buffered']
    #allocation6 [shape = 's32[1]{0}', space=sflag, size = 0x4, scoped, tag = 'scoped memory for tpu_custom_call.1']
    #allocation7 [shape = 'u8[1024]{0}', space=vmem, size = 0x400, scoped, tag = 'output window, operand 0, single buffered']
    #allocation8 [shape = 'u8[1024]{0}', space=vmem, size = 0x400, scoped, tag = 'output window, operand 1, single buffered']
    #allocation9 [shape = 's32[1]{0}', space=sflag, size = 0x4, scoped, tag = 'scoped memory for tpu_custom_call.1']
    %17 = vsyncpa [#allocation3], 0
    %18 = vsyncpa [#allocation6], 0
    %19 = vsyncpa [#allocation4], 0
    %20 = vsyncpa [#allocation9], 0
    // Predicated region
    $region2: #{tpu_custom_call.1} parent=1 // pred_check
      _
    $region3: #{tpu_custom_call.1} parent=1 // pred_check_branch
      %22 = sbr.rel (0) target = $region5
    $region4: #{tpu_custom_call.1} parent=1 // pred_region
      _
    $region5: #{tpu_custom_call.1} parent=1 // pred_fallthru
      _
    // Predicated region
    $region6: #{tpu_custom_call.1} parent=1 // pred_check
      _
    $region7: #{tpu_custom_call.1} parent=1 // pred_check_branch
      %24 = sbr.rel (0) target = $region9
    $region8: #{tpu_custom_call.1} parent=1 // pred_region
      _
    $region9: #{tpu_custom_call.1} parent=1 // pred_fallthru
      _
    // Predicated region
    $region10: #{tpu_custom_call.1} parent=1 // pred_check
      _
    $region11: #{tpu_custom_call.1} parent=1 // pred_check_branch
      %26 = sbr.rel (0) target = $region13
    $region12: #{tpu_custom_call.1} parent=1 // pred_region
      _
    $region13: #{tpu_custom_call.1} parent=1 // pred_fallthru
      _
    // Predicated region
    $region14: #{tpu_custom_call.1} parent=1 // pred_check
      _
    $region15: #{tpu_custom_call.1} parent=1 // pred_check_branch
      %28 = sbr.rel (0) target = $region17
    $region16: #{tpu_custom_call.1} parent=1 // pred_region
      _
    $region17: #{tpu_custom_call.1} parent=1 // pred_fallthru
      _
    // Predicated region
    $region18: #{tpu_custom_call.1} parent=1 // pred_check
      _
    $region19: #{tpu_custom_call.1} parent=1 // pred_check_branch
      %30 = sbr.rel (0) target = $region21
    $region20: #{tpu_custom_call.1} parent=1 // pred_region
      %32 = vsyncadd [#allocation3], 0
      %s33 = sshll.u32 %s4, 4
      %s34 = int_to_ptr.hbm [resolvable:$true] %s33
      %s35 = sshll.u32 [#allocation2], 4
      %s36 = int_to_ptr.vmem [resolvable:$true] %s35
      %41 = dma.hbm_to_vmem [thread:$0]  %s34, 1024, %s36, [#allocation3], 64, 64, 4
    $region21: #{tpu_custom_call.1} parent=1 // pred_fallthru
      _
    // Predicated region
    $region22: #{tpu_custom_call.1} parent=1 // pred_check
      _
    $region23: #{tpu_custom_call.1} parent=1 // pred_check_branch
      %43 = sbr.rel (0) target = $region25
    $region24: #{tpu_custom_call.1} parent=1 // pred_region
      _
    $region25: #{tpu_custom_call.1} parent=1 // pred_fallthru
      _
    // Predicated region
    $region26: #{tpu_custom_call.1} parent=1 // pred_check
      _
    $region27: #{tpu_custom_call.1} parent=1 // pred_check_branch
      %45 = sbr.rel (0) target = $region29
    $region28: #{tpu_custom_call.1} parent=1 // pred_region
      _
    $region29: #{tpu_custom_call.1} parent=1 // pred_fallthru
      _
    // Predicated region
    $region30: #{tpu_custom_call.1} parent=1 // pred_check
      _
    $region31: #{tpu_custom_call.1} parent=1 // pred_check_branch
      %47 = sbr.rel (0) target = $region33
    $region32: #{tpu_custom_call.1} parent=1 // pred_region
      %49 = vsyncadd [#allocation6], 0
      %s50 = sshll.u32 %s7, 4
      %s51 = int_to_ptr.hbm [resolvable:$true] %s50
      %s52 = sshll.u32 [#allocation5], 4
      %s53 = int_to_ptr.vmem [resolvable:$true] %s52
      %58 = dma.hbm_to_vmem [thread:$0]  %s51, 2048, %s53, [#allocation6], 128, 128, 8
    $region33: #{tpu_custom_call.1} parent=1 // pred_fallthru
      _
    // Predicated region
    $region34: #{tpu_custom_call.1} parent=1 // pred_check
      _
    $region35: #{tpu_custom_call.1} parent=1 // pred_check_branch
      %60 = sbr.rel (0) target = $region37
    $region36: #{tpu_custom_call.1} parent=1 // pred_region
      _
    $region37: #{tpu_custom_call.1} parent=1 // pred_fallthru
      _
    // Predicated region
    $region38: #{tpu_custom_call.1} parent=1 // pred_check
      _
    $region39: #{tpu_custom_call.1} parent=1 // pred_check_branch
      %62 = sbr.rel (0) target = $region41
    $region40: #{tpu_custom_call.1} parent=1 // pred_region
      %64 = dma.done [#allocation3], 1024
    $region41: #{tpu_custom_call.1} parent=1 // pred_fallthru
      _
    // Predicated region
    $region42: #{tpu_custom_call.1} parent=1 // pred_check
      _
    $region43: #{tpu_custom_call.1} parent=1 // pred_check_branch
      %66 = sbr.rel (0) target = $region45
    $region44: #{tpu_custom_call.1} parent=1 // pred_region
      %68 = dma.done [#allocation6], 2048
    $region45: #{tpu_custom_call.1} parent=1 // pred_fallthru
      _
    %v69 = vld [vmem:[%s0] sm:$0xf]
    %v70 = vld [vmem:[%s0 + $0x4] sm:$0xf]
    %v71 = vld [vmem:[%s0 + $0x8] sm:$0xf]
    %v72 = vld [vmem:[%s0 + $0xc] sm:$0xf]
    %v73 = vld [vmem:[%s2] sm:$0xf]
    %v74 = vld [vmem:[%s2 + $0x4] sm:$0xf]
    %v75 = vld [vmem:[%s2 + $0x8] sm:$0xf]
    %v76 = vld [vmem:[%s2 + $0xc] sm:$0xf]
    %v77 = vld [vmem:[%s2 + $0x10] sm:$0xf]
    %v78 = vld [vmem:[%s2 + $0x14] sm:$0xf]
    %v79 = vld [vmem:[%s2 + $0x18] sm:$0xf]
    %v80 = vld [vmem:[%s2 + $0x1c] sm:$0xf]
    %v81 = vld [vmem:[%s2 + $0x20] sm:$0xf]
    %v82 = vld [vmem:[%s2 + $0x24] sm:$0xf]
    %v83 = vld [vmem:[%s2 + $0x28] sm:$0xf]
    %v84 = vld [vmem:[%s2 + $0x2c] sm:$0xf]
    %v85 = vld [vmem:[%s2 + $0x30] sm:$0xf]
    %v86 = vld [vmem:[%s2 + $0x34] sm:$0xf]
    %v87 = vld [vmem:[%s2 + $0x38] sm:$0xf]
    %v88 = vld [vmem:[%s2 + $0x3c] sm:$0xf]
    %v89 = vld [vmem:[%s3] sm:$0x1]
    %v91 = vperm.slane %v89, 0
    %v97 = vunpack.c.l.b16 %v69
    %v98 = vunpack.c.l.b16 %v70
    %v99 = vunpack.c.l.b16 %v71
    %v100 = vunpack.c.l.b16 %v72
    %v101 = vpack.c.b16 %v98, %v97
    %v102 = vpack.c.b16 %v100, %v99
    %v121 = vunpack.c.l.b16 %v73
    %v122 = vunpack.c.l.b16 %v74
    %v123 = vunpack.c.l.b16 %v75
    %v124 = vunpack.c.l.b16 %v76
    %v125 = vunpack.c.l.b16 %v77
    %v126 = vunpack.c.l.b16 %v78
    %v127 = vunpack.c.l.b16 %v79
    %v128 = vunpack.c.l.b16 %v80
    %v129 = vunpack.c.l.b16 %v81
    %v130 = vunpack.c.l.b16 %v82
    %v131 = vunpack.c.l.b16 %v83
    %v132 = vunpack.c.l.b16 %v84
    %v133 = vunpack.c.l.b16 %v85
    %v134 = vunpack.c.l.b16 %v86
    %v135 = vunpack.c.l.b16 %v87
    %v136 = vunpack.c.l.b16 %v88
    %v137 = vpack.c.b16 %v122, %v121
    %v138 = vpack.c.b16 %v124, %v123
    %v139 = vpack.c.b16 %v126, %v125
    %v140 = vpack.c.b16 %v128, %v127
    %v141 = vpack.c.b16 %v130, %v129
    %v142 = vpack.c.b16 %v132, %v131
    %v143 = vpack.c.b16 %v134, %v133
    %v144 = vpack.c.b16 %v136, %v135
    %153 = vmatpush.bf16.msra.mxu0 %v144
    %154 = vmatpush.bf16.msra.mxu0 %v143
    %155 = vmatpush.bf16.msra.mxu0 %v142
    %156 = vmatpush.bf16.msra.mxu0 %v141
    %157 = vmatpush.bf16.msra.mxu0 %v140
    %158 = vmatpush.bf16.msra.mxu0 %v139
    %159 = vmatpush.bf16.msra.mxu0 %v138
    %160 = vmatpush.bf16.msra.mxu0 %v137
    %161 = vmatmul.bf16.gmra.mxu0 %v101
    %v162 = vpop.f32.mrf.mxu0
    %v163 = vadd.f32 %v91, %v162
    %v164 = vpop.f32.mrf.mxu0
    %v165 = vadd.f32 %v91, %v164
    %166 = vmatmul.bf16.gmra.mxu0 %v102
    %v167 = vpop.f32.mrf.mxu0
    %v168 = vadd.f32 %v91, %v167
    %v169 = vpop.f32.mrf.mxu0
    %v170 = vadd.f32 %v91, %v169
    %171 = vdwg.mxu0
    %v172 = vmax.f32 %v163, 0.0
    %v173 = vmax.f32 %v165, 0.0
    %v174 = vmax.f32 %v168, 0.0
    %v175 = vmax.f32 %v170, 0.0
    %v176 = vpack.c.bf16 %v173, %v172
    %v177 = vpack.c.bf16 %v175, %v174
    %v178 = vld [vmem:[#allocation2] sm:$0xf]
    %v179 = vld [vmem:[#allocation2 + $0x4] sm:$0xf]
    %v180 = vld [vmem:[#allocation2 + $0x8] sm:$0xf]
    %v181 = vld [vmem:[#allocation2 + $0xc] sm:$0xf]
    %v182 = vld [vmem:[#allocation2 + $0x10] sm:$0xf]
    %v183 = vld [vmem:[#allocation2 + $0x14] sm:$0xf]
    %v184 = vld [vmem:[#allocation2 + $0x18] sm:$0xf]
    %v185 = vld [vmem:[#allocation2 + $0x1c] sm:$0xf]
    %v186 = vld [vmem:[#allocation2 + $0x20] sm:$0xf]
    %v187 = vld [vmem:[#allocation2 + $0x24] sm:$0xf]
    %v188 = vld [vmem:[#allocation2 + $0x28] sm:$0xf]
    %v189 = vld [vmem:[#allocation2 + $0x2c] sm:$0xf]
    %v190 = vld [vmem:[#allocation2 + $0x30] sm:$0xf]
    %v191 = vld [vmem:[#allocation2 + $0x34] sm:$0xf]
    %v192 = vld [vmem:[#allocation2 + $0x38] sm:$0xf]
    %v193 = vld [vmem:[#allocation2 + $0x3c] sm:$0xf]
    %v194 = vld [vmem:[%s5] sm:$0x1]
    %v196 = vperm.slane %v194, 0
    %v214 = vunpack.c.l.b16 %v178
    %v215 = vunpack.c.l.b16 %v179
    %v216 = vunpack.c.l.b16 %v180
    %v217 = vunpack.c.l.b16 %v181
    %v218 = vunpack.c.l.b16 %v182
    %v219 = vunpack.c.l.b16 %v183
    %v220 = vunpack.c.l.b16 %v184
    %v221 = vunpack.c.l.b16 %v185
    %v222 = vunpack.c.l.b16 %v186
    %v223 = vunpack.c.l.b16 %v187
    %v224 = vunpack.c.l.b16 %v188
    %v225 = vunpack.c.l.b16 %v189
    %v226 = vunpack.c.l.b16 %v190
    %v227 = vunpack.c.l.b16 %v191
    %v228 = vunpack.c.l.b16 %v192
    %v229 = vunpack.c.l.b16 %v193
    %v230 = vpack.c.b16 %v215, %v214
    %v231 = vpack.c.b16 %v217, %v216
    %v232 = vpack.c.b16 %v219, %v218
    %v233 = vpack.c.b16 %v221, %v220
    %v234 = vpack.c.b16 %v223, %v222
    %v235 = vpack.c.b16 %v225, %v224
    %v236 = vpack.c.b16 %v227, %v226
    %v237 = vpack.c.b16 %v229, %v228
    %246 = vmatpush.bf16.msra.mxu0 %v237
    %247 = vmatpush.bf16.msra.mxu0 %v236
    %248 = vmatpush.bf16.msra.mxu0 %v235
    %249 = vmatpush.bf16.msra.mxu0 %v234
    %250 = vmatpush.bf16.msra.mxu0 %v233
    %251 = vmatpush.bf16.msra.mxu0 %v232
    %252 = vmatpush.bf16.msra.mxu0 %v231
    %253 = vmatpush.bf16.msra.mxu0 %v230
    %254 = vmatmul.bf16.gmra.mxu0 %v176
    %v255 = vpop.f32.mrf.mxu0
    %v256 = vadd.f32 %v196, %v255
    %v257 = vpop.f32.mrf.mxu0
    %v258 = vadd.f32 %v196, %v257
    %259 = vmatmul.bf16.gmra.mxu0 %v177
    %v260 = vpop.f32.mrf.mxu0
    %v261 = vadd.f32 %v196, %v260
    %v262 = vpop.f32.mrf.mxu0
    %v263 = vadd.f32 %v196, %v262
    %264 = vdwg.mxu0
    %v265 = vmax.f32 %v256, 0.0
    %v266 = vmax.f32 %v258, 0.0
    %v267 = vmax.f32 %v261, 0.0
    %v268 = vmax.f32 %v263, 0.0
    %v269 = vld [vmem:[%s6] sm:$0xf]
    %v270 = vld [vmem:[%s6 + $0x4] sm:$0xf]
    %v271 = vld [vmem:[%s6 + $0x8] sm:$0xf]
    %v272 = vld [vmem:[%s6 + $0xc] sm:$0xf]
    %v273 = vld [vmem:[%s6 + $0x10] sm:$0xf]
    %v274 = vld [vmem:[%s6 + $0x14] sm:$0xf]
    %v275 = vld [vmem:[%s6 + $0x18] sm:$0xf]
    %v276 = vld [vmem:[%s6 + $0x1c] sm:$0xf]
    %v277 = vld [vmem:[%s6 + $0x20] sm:$0xf]
    %v278 = vld [vmem:[%s6 + $0x24] sm:$0xf]
    %v279 = vld [vmem:[%s6 + $0x28] sm:$0xf]
    %v280 = vld [vmem:[%s6 + $0x2c] sm:$0xf]
    %v281 = vld [vmem:[%s6 + $0x30] sm:$0xf]
    %v282 = vld [vmem:[%s6 + $0x34] sm:$0xf]
    %v283 = vld [vmem:[%s6 + $0x38] sm:$0xf]
    %v284 = vld [vmem:[%s6 + $0x3c] sm:$0xf]
    %v301 = vunpack.c.l.b16 %v269
    %v302 = vunpack.c.l.b16 %v270
    %v303 = vunpack.c.l.b16 %v271
    %v304 = vunpack.c.l.b16 %v272
    %v305 = vunpack.c.l.b16 %v273
    %v306 = vunpack.c.l.b16 %v274
    %v307 = vunpack.c.l.b16 %v275
    %v308 = vunpack.c.l.b16 %v276
    %v309 = vunpack.c.l.b16 %v277
    %v310 = vunpack.c.l.b16 %v278
    %v311 = vunpack.c.l.b16 %v279
    %v312 = vunpack.c.l.b16 %v280
    %v313 = vunpack.c.l.b16 %v281
    %v314 = vunpack.c.l.b16 %v282
    %v315 = vunpack.c.l.b16 %v283
    %v316 = vunpack.c.l.b16 %v284
    %v317 = vpack.c.b16 %v302, %v301
    %v318 = vpack.c.b16 %v304, %v303
    %v319 = vpack.c.b16 %v306, %v305
    %v320 = vpack.c.b16 %v308, %v307
    %v321 = vpack.c.b16 %v310, %v309
    %v322 = vpack.c.b16 %v312, %v311
    %v323 = vpack.c.b16 %v314, %v313
    %v324 = vpack.c.b16 %v316, %v315
    %333 = vmatpush.bf16.msra.mxu0 %v324
    %334 = vmatpush.bf16.msra.mxu0 %v323
    %335 = vmatpush.bf16.msra.mxu0 %v322
    %336 = vmatpush.bf16.msra.mxu0 %v321
    %337 = vmatpush.bf16.msra.mxu0 %v320
    %338 = vmatpush.bf16.msra.mxu0 %v319
    %339 = vmatpush.bf16.msra.mxu0 %v318
    %340 = vmatpush.bf16.msra.mxu0 %v317
    %341 = vmatmul.bf16.gmra.mxu0 %v176
    %v342 = vpop.f32.mrf.mxu0
    %v343 = vadd.f32 0.0, %v342
    %v344 = vpop.f32.mrf.mxu0
    %v345 = vadd.f32 0.0, %v344
    %346 = vmatmul.bf16.gmra.mxu0 %v177
    %v347 = vpop.f32.mrf.mxu0
    %v348 = vadd.f32 0.0, %v347
    %v349 = vpop.f32.mrf.mxu0
    %v350 = vadd.f32 0.0, %v349
    %351 = vdwg.mxu0
    %v352 = vld [vmem:[%s1] sm:$0xff]
    %v353 = vld [vmem:[%s1 + $0x8] sm:$0xff]
    %v354 = vld [vmem:[%s1 + $0x10] sm:$0xff]
    %v355 = vld [vmem:[%s1 + $0x18] sm:$0xff]
    %vm356 = vcmp.eq.s32.totalorder %v352, 1
    %vm357 = vcmp.eq.s32.totalorder %v353, 1
    %vm358 = vcmp.eq.s32.totalorder %v354, 1
    %vm359 = vcmp.eq.s32.totalorder %v355, 1
    %v360 = vsel %vm356, -1e+30, %v343
    %v361 = vsel %vm357, -1e+30, %v345
    %v362 = vsel %vm358, -1e+30, %v348
    %v363 = vsel %vm359, -1e+30, %v350
    %vm364 = vcmask 7168
    %365 = vst.msk [vmem:[%s11] sm:$0xff] %vm364, %v360
    %366 = vst.msk [vmem:[%s11 + $0x8] sm:$0xff] %vm364, %v361
    %367 = vst.msk [vmem:[%s11 + $0x10] sm:$0xff] %vm364, %v362
    %368 = vst.msk [vmem:[%s11 + $0x18] sm:$0xff] %vm364, %v363
    %v369 = vsel %vm364, %v360, -inf
    %v370 = vsel %vm364, %v361, -inf
    %v371 = vmax.f32 %v369, %v370
    %v372 = vrot.slane %v371, 4
    %v373 = vmax.f32 %v371, %v372
    %v374 = vrot.slane %v373, 2
    %v375 = vmax.f32 %v373, %v374
    %v376 = vrot.slane %v375, 1
    %v377 = vmax.f32 %v375, %v376
    %v378 = vsel %vm364, %v362, -inf
    %v379 = vsel %vm364, %v363, -inf
    %v380 = vmax.f32 %v378, %v379
    %v381 = vrot.slane %v380, 4
    %v382 = vmax.f32 %v380, %v381
    %v383 = vrot.slane %v382, 2
    %v384 = vmax.f32 %v382, %v383
    %v385 = vrot.slane %v384, 1
    %v386 = vmax.f32 %v384, %v385
    %v387 = vsub.f32 %v360, %v377
    %v388 = vsub.f32 %v361, %v377
    %v389 = vsub.f32 %v362, %v386
    %v390 = vsub.f32 %v363, %v386
    %v391 = vmul.f32 %v387, 1.442695
    %v392 = vpow.pop %v391
    %v393 = vmul.f32 %v388, 1.442695
    %v394 = vpow.pop %v393
    %v395 = vmul.f32 %v389, 1.442695
    %v396 = vpow.pop %v395
    %v397 = vmul.f32 %v390, 1.442695
    %v398 = vpow.pop %v397
    %v399 = vsel %vm364, %v392, 0.0
    %v400 = vsel %vm364, %v394, 0.0
    %v401 = vadd.f32 %v399, %v400
    %v402 = vrot.slane %v401, 4
    %v403 = vadd.f32 %v401, %v402
    %v404 = vrot.slane %v403, 2
    %v405 = vadd.f32 %v403, %v404
    %v406 = vrot.slane %v405, 1
    %v407 = vadd.f32 %v405, %v406
    %v408 = vsel %vm364, %v396, 0.0
    %v409 = vsel %vm364, %v398, 0.0
    %v410 = vadd.f32 %v408, %v409
    %v411 = vrot.slane %v410, 4
    %v412 = vadd.f32 %v410, %v411
    %v413 = vrot.slane %v412, 2
    %v414 = vadd.f32 %v412, %v413
    %v415 = vrot.slane %v414, 1
    %v416 = vadd.f32 %v414, %v415
    %v417 = vrcp.pop %v407
    %v418 = vrcp.pop %v416
    %v419 = vmul.f32 %v392, %v417
    %v420 = vmul.f32 %v394, %v417
    %v421 = vmul.f32 %v396, %v418
    %v422 = vmul.f32 %v398, %v418
    %v423 = vadd.f32 %v419, 0.0
    %v424 = vadd.f32 %v420, 0.0
    %v425 = vadd.f32 %v421, 0.0
    %v426 = vadd.f32 %v422, 0.0
    %428 = vset.pattern.permute.xlu0 0
    %429 = vperm.xlu0 %428, %v423
    %v430 = vpop.permute.xlu0 %429
    %433 = vset.pattern.permute.xlu0 0
    %434 = vperm.xlu0 %433, %v424
    %v435 = vpop.permute.xlu0 %434
    %438 = vset.pattern.permute.xlu0 0
    %439 = vperm.xlu0 %438, %v425
    %v440 = vpop.permute.xlu0 %439
    %443 = vset.pattern.permute.xlu0 0
    %444 = vperm.xlu0 %443, %v426
    %v445 = vpop.permute.xlu0 %444
    %v447 = vmul.f32 %v430, %v265
    %v448 = vmul.f32 %v435, %v266
    %v449 = vmul.f32 %v440, %v267
    %v450 = vmul.f32 %v445, %v268
    %v451 = vadd.f32 %v447, %v448
    %v452 = vrot.slane %v451, 4
    %v453 = vadd.f32 %v451, %v452
    %v454 = vrot.slane %v453, 2
    %v455 = vadd.f32 %v453, %v454
    %v456 = vrot.slane %v455, 1
    %v457 = vadd.f32 %v455, %v456
    %v458 = vadd.f32 %v449, %v450
    %v459 = vrot.slane %v458, 4
    %v460 = vadd.f32 %v458, %v459
    %v461 = vrot.slane %v460, 2
    %v462 = vadd.f32 %v460, %v461
    %v463 = vrot.slane %v462, 1
    %v464 = vadd.f32 %v462, %v463
    %465 = vst [vmem:[#allocation7] sm:$0x1] %v457
    %466 = vst [vmem:[#allocation7 + $0x1] sm:$0x1] %v464
    %v467 = vld [vmem:[#allocation5] sm:$0xff]
    %v468 = vld [vmem:[#allocation5 + $0x8] sm:$0xff]
    %v469 = vld [vmem:[#allocation5 + $0x10] sm:$0xff]
    %v470 = vld [vmem:[#allocation5 + $0x18] sm:$0xff]
    %v471 = vld [vmem:[#allocation5 + $0x20] sm:$0xff]
    %v472 = vld [vmem:[#allocation5 + $0x28] sm:$0xff]
    %v473 = vld [vmem:[#allocation5 + $0x30] sm:$0xff]
    %v474 = vld [vmem:[#allocation5 + $0x38] sm:$0xff]
    %v475 = vld [vmem:[#allocation5 + $0x40] sm:$0xff]
    %v476 = vld [vmem:[#allocation5 + $0x48] sm:$0xff]
    %v477 = vld [vmem:[#allocation5 + $0x50] sm:$0xff]
    %v478 = vld [vmem:[#allocation5 + $0x58] sm:$0xff]
    %v479 = vld [vmem:[#allocation5 + $0x60] sm:$0xff]
    %v480 = vld [vmem:[#allocation5 + $0x68] sm:$0xff]
    %v481 = vld [vmem:[#allocation5 + $0x70] sm:$0xff]
    %v482 = vld [vmem:[#allocation5 + $0x78] sm:$0xff]
    %v483 = vld [vmem:[%s8] sm:$0x1]
    %v485 = vperm.slane %v483, 0
    %vm489 = vcmask 1041409
    %v490 = vsel %vm489, %v464, %v457
    %492 = vmatpush.msra.mxu0 %v482
    %493 = vmatpush.msra.mxu0 %v481
    %494 = vmatpush.msra.mxu0 %v480
    %495 = vmatpush.msra.mxu0 %v479
    %496 = vmatpush.msra.mxu0 %v478
    %497 = vmatpush.msra.mxu0 %v477
    %498 = vmatpush.msra.mxu0 %v476
    %499 = vmatpush.msra.mxu0 %v475
    %500 = vmatpush.msra.mxu0 %v474
    %501 = vmatpush.msra.mxu0 %v473
    %502 = vmatpush.msra.mxu0 %v472
    %503 = vmatpush.msra.mxu0 %v471
    %504 = vmatpush.msra.mxu0 %v470
    %505 = vmatpush.msra.mxu0 %v469
    %506 = vmatpush.msra.mxu0 %v468
    %507 = vmatpush.msra.mxu0 %v467
    %508 = vmatmul.f32.gmra.mxu0 %v490
    %v509 = vpop.f32.mrf.mxu0
    %v510 = vadd.f32 %v485, %v509
    %511 = vdwg.mxu0
    %v513 = vrot.slane %v510, 1
    %515 = vst [vmem:[#allocation8] sm:$0x1] %v510
    %516 = vst [vmem:[#allocation8 + $0x1] sm:$0x1] %v513
    // Predicated region
    $region46: #{tpu_custom_call.1} parent=1 // pred_check
      _
    $region47: #{tpu_custom_call.1} parent=1 // pred_check_branch
      %518 = sbr.rel (0) target = $region49
    $region48: #{tpu_custom_call.1} parent=1 // pred_region
      %520 = vsyncadd [#allocation4], 0
      %s521 = sshll.u32 [#allocation7], 4
      %s522 = int_to_ptr.vmem [resolvable:$true] %s521
      %s523 = sshll.u32 %s9, 4
      %s524 = int_to_ptr.hbm [resolvable:$true] %s523
      %529 = dma.vmem_to_hbm [thread:$0]  %s522, 32, %s524, [#allocation4], 16, 16, 1
    $region49: #{tpu_custom_call.1} parent=1 // pred_fallthru
      _
    // Predicated region
    $region50: #{tpu_custom_call.1} parent=1 // pred_check
      _
    $region51: #{tpu_custom_call.1} parent=1 // pred_check_branch
      %531 = sbr.rel (0) target = $region53
    $region52: #{tpu_custom_call.1} parent=1 // pred_region
      %533 = vsyncadd [#allocation9], 0
      %s534 = sshll.u32 [#allocation8], 4
      %s535 = int_to_ptr.vmem [resolvable:$true] %s534
      %s536 = sshll.u32 %s10, 4
      %s537 = int_to_ptr.hbm [resolvable:$true] %s536
      %542 = dma.vmem_to_hbm [thread:$0]  %s535, 32, %s537, [#allocation9], 16, 16, 1
    $region53: #{tpu_custom_call.1} parent=1 // pred_fallthru
      _
    // Predicated region
    $region54: #{tpu_custom_call.1} parent=1 // pred_check
      _
    $region55: #{tpu_custom_call.1} parent=1 // pred_check_branch
      %544 = sbr.rel (0) target = $region57
    $region56: #{tpu_custom_call.1} parent=1 // pred_region
      _
    $region57: #{tpu_custom_call.1} parent=1 // pred_fallthru
      _
    // Predicated region
    $region58: #{tpu_custom_call.1} parent=1 // pred_check
      _
    $region59: #{tpu_custom_call.1} parent=1 // pred_check_branch
      %546 = sbr.rel (0) target = $region61
    $region60: #{tpu_custom_call.1} parent=1 // pred_region
      %548 = dma.done [#allocation4], 32
    $region61: #{tpu_custom_call.1} parent=1 // pred_fallthru
      _
    // Predicated region
    $region62: #{tpu_custom_call.1} parent=1 // pred_check
      _
    $region63: #{tpu_custom_call.1} parent=1 // pred_check_branch
      %550 = sbr.rel (0) target = $region65
    $region64: #{tpu_custom_call.1} parent=1 // pred_region
      %552 = dma.done [#allocation9], 32
    $region65: #{tpu_custom_call.1} parent=1 // pred_fallthru
      _
    // Predicated region
    $region66: #{tpu_custom_call.1} parent=1 // pred_check
      _
    $region67: #{tpu_custom_call.1} parent=1 // pred_check_branch
      %554 = sbr.rel (0) target = $region69
    $region68: #{tpu_custom_call.1} parent=1 // pred_region
      _
    $region69: #{tpu_custom_call.1} parent=1 // pred_fallthru
      _
    %555 = vsyncpa [#allocation3], 1
    %556 = vsyncpa [#allocation6], 1
    %557 = vsyncpa [#allocation4], 1
    %558 = vsyncpa [#allocation9], 1

</llo_original>
